<compile_context>
chip_gen: v6e
topology: v6e:2x2x1
jax: 0.10.0
libtpu: 0.0.40
codegen_flags: <defaults>
</compile_context>

<pallas_src>
import functools

import jax
import jax.numpy as jnp
from jax import lax
from jax.experimental import pallas as pl
from jax.experimental.pallas import tpu as pltpu


# ----------------------------------------------------------------------------
# Row-tile chooser: large (HBM-bound kernels want >=512 rows), multiple of 8,
# never an unbounded "single huge block".
# ----------------------------------------------------------------------------
def _pick_row_tile(n, cap=1024):
    if n <= cap:
        return n
    t = cap - (cap % 8)
    for cand in range(t, 7, -8):          # prefer an even divisor of n
        if n % cand == 0:
            return cand
    return t                              # cdiv grid handles the remainder block


# ----------------------------------------------------------------------------
# Kernel 1: generic pointwise (1x1 conv) == matmul over channels + bias
# (used only for the tiny pooled-kv projection)
# ----------------------------------------------------------------------------
def _pointwise_kernel(x_ref, w_ref, b_ref, o_ref):
    y = jnp.dot(x_ref[...], w_ref[...], preferred_element_type=jnp.float32)
    o_ref[...] = (y + b_ref[...]).astype(o_ref.dtype)


def pointwise(x, w, b):
    n, cin = x.shape
    cout = w.shape[1]
    tn = _pick_row_tile(n)
    return pl.pallas_call(
        _pointwise_kernel,
        out_shape=jax.ShapeDtypeStruct((n, cout), x.dtype),
        grid=(pl.cdiv(n, tn),),
        in_specs=[
            pl.BlockSpec((tn, cin), lambda i: (i, 0)),
            pl.BlockSpec((cin, cout), lambda i: (0, 0)),
            pl.BlockSpec((1, cout), lambda i: (0, 0)),
        ],
        out_specs=pl.BlockSpec((tn, cout), lambda i: (i, 0)),
        compiler_params=pltpu.CompilerParams(dimension_semantics=("parallel",)),
    )(x, w, b.reshape(1, cout))


# ----------------------------------------------------------------------------
# Kernel 2: fused input projections: qkv = x@Wqkv+b, gq = x@Wq+b
# (x is streamed from HBM exactly once for both projections)
# ----------------------------------------------------------------------------
def _in_proj_kernel(x_ref, wq_ref, bq_ref, wg_ref, bg_ref, qkv_ref, gq_ref):
    x = x_ref[...]
    qkv_ref[...] = (jnp.dot(x, wq_ref[...], preferred_element_type=jnp.float32)
                    + bq_ref[...]).astype(qkv_ref.dtype)
    gq_ref[...] = (jnp.dot(x, wg_ref[...], preferred_element_type=jnp.float32)
                   + bg_ref[...]).astype(gq_ref.dtype)


def fused_in_proj(x, w_qkv, b_qkv, w_q, b_q):
    n, cin = x.shape
    c1 = w_qkv.shape[1]
    c2 = w_q.shape[1]
    tn = _pick_row_tile(n)
    return pl.pallas_call(
        _in_proj_kernel,
        out_shape=(jax.ShapeDtypeStruct((n, c1), x.dtype),
                   jax.ShapeDtypeStruct((n, c2), x.dtype)),
        grid=(pl.cdiv(n, tn),),
        in_specs=[
            pl.BlockSpec((tn, cin), lambda i: (i, 0)),
            pl.BlockSpec((cin, c1), lambda i: (0, 0)),
            pl.BlockSpec((1, c1), lambda i: (0, 0)),
            pl.BlockSpec((cin, c2), lambda i: (0, 0)),
            pl.BlockSpec((1, c2), lambda i: (0, 0)),
        ],
        out_specs=(pl.BlockSpec((tn, c1), lambda i: (i, 0)),
                   pl.BlockSpec((tn, c2), lambda i: (i, 0))),
        compiler_params=pltpu.CompilerParams(dimension_semantics=("parallel",)),
    )(x, w_qkv, b_qkv.reshape(1, c1), w_q, b_q.reshape(1, c2))


# ----------------------------------------------------------------------------
# Kernel 3: depthwise KxK conv (stride 1, SAME), NHWC, one image per grid step.
# Padding is done inside the kernel in a zero-filled VMEM scratch (no HBM pad).
# ----------------------------------------------------------------------------
def _depthwise_kernel(x_ref, w_ref, b_ref, o_ref, xp_ref, *, H, W, K):
    p = K // 2
    xp_ref[...] = jnp.zeros_like(xp_ref)        # zero border (cheap VMEM memset)
    xp_ref[p:p + H, p:p + W, :] = x_ref[0]      # interior
    xp = xp_ref[...]                            # (H+K-1, W+K-1, C)
    wk = w_ref[...]                             # (K, K, C)
    acc = jnp.zeros((H, W, xp.shape[-1]), jnp.float32)
    for ki in range(K):
        for kj in range(K):
            acc = acc + xp[ki:ki + H, kj:kj + W, :] * wk[ki, kj]
    o_ref[0] = (acc + b_ref[...]).astype(o_ref.dtype)


def depthwise_conv(x, w, b, k):
    # x: (B, H, W, C); w: (K, K, C); b: (C,)
    B, H, W, C = x.shape
    p = k // 2
    kern = functools.partial(_depthwise_kernel, H=H, W=W, K=k)
    # TODO(synk): for large H/W (v7x 64 MiB VMEM), tile spatially in row strips
    # with a (K-1)-row halo instead of one full image per grid step.
    return pl.pallas_call(
        kern,
        out_shape=jax.ShapeDtypeStruct((B, H, W, C), x.dtype),
        grid=(B,),
        in_specs=[
            pl.BlockSpec((1, H, W, C), lambda i: (i, 0, 0, 0)),
            pl.BlockSpec((k, k, C), lambda i: (0, 0, 0)),
            pl.BlockSpec((1, C), lambda i: (0, 0)),
        ],
        out_specs=pl.BlockSpec((1, H, W, C), lambda i: (i, 0, 0, 0)),
        scratch_shapes=[pltpu.VMEM((H + 2 * p, W + 2 * p, C), jnp.float32)],
        compiler_params=pltpu.CompilerParams(dimension_semantics=("parallel",)),
    )(x, w, b.reshape(1, C))


# ----------------------------------------------------------------------------
# Kernel 4: fused high-frequency attention + concat + final 1x1 projection
#   hf  = tanh( AttnMap(q*k) * scalor ) * v         (AttnMap: 1x1 -> swish -> 1x1)
#   out = hf @ Wproj[:gc] + lf @ Wproj[gc:] + bproj (concat fused away)
# q/k/v are static column slices of the fused qkv tile (no HBM slicing).
# ----------------------------------------------------------------------------
def _hf_proj_kernel(qkv_ref, lf_ref, w1_ref, b1_ref, w2_ref, b2_ref,
                    pwh_ref, pwl_ref, pb_ref, o_ref, *, gc, scalor):
    qkv = qkv_ref[...]
    q = qkv[:, 0 * gc:1 * gc]
    k = qkv[:, 1 * gc:2 * gc]
    v = qkv[:, 2 * gc:3 * gc]
    t = jnp.dot(q * k, w1_ref[...], preferred_element_type=jnp.float32) + b1_ref[...]
    t = t * jax.nn.sigmoid(t)                       # MemoryEfficientSwish
    t = jnp.dot(t, w2_ref[...], preferred_element_type=jnp.float32) + b2_ref[...]
    hf = jnp.tanh(t * scalor) * v
    out = (jnp.dot(hf, pwh_ref[...], preferred_element_type=jnp.float32)
           + jnp.dot(lf_ref[...], pwl_ref[...], preferred_element_type=jnp.float32)
           + pb_ref[...])
    o_ref[...] = out.astype(o_ref.dtype)


def hf_attn_proj(qkv, lf, w1, b1, w2, b2, pwh, pwl, pb, gc, scalor):
    n, c3 = qkv.shape
    cl = lf.shape[1]
    cout = pwh.shape[1]
    tn = _pick_row_tile(n)
    kern = functools.partial(_hf_proj_kernel, gc=gc, scalor=scalor)
    return pl.pallas_call(
        kern,
        out_shape=jax.ShapeDtypeStruct((n, cout), qkv.dtype),
        grid=(pl.cdiv(n, tn),),
        in_specs=[
            pl.BlockSpec((tn, c3), lambda i: (i, 0)),
            pl.BlockSpec((tn, cl), lambda i: (i, 0)),
            pl.BlockSpec((gc, gc), lambda i: (0, 0)),
            pl.BlockSpec((1, gc), lambda i: (0, 0)),
            pl.BlockSpec((gc, gc), lambda i: (0, 0)),
            pl.BlockSpec((1, gc), lambda i: (0, 0)),
            pl.BlockSpec((gc, cout), lambda i: (0, 0)),
            pl.BlockSpec((cl, cout), lambda i: (0, 0)),
            pl.BlockSpec((1, cout), lambda i: (0, 0)),
        ],
        out_specs=pl.BlockSpec((tn, cout), lambda i: (i, 0)),
        compiler_params=pltpu.CompilerParams(dimension_semantics=("parallel",)),
    )(qkv, lf, w1, b1.reshape(1, gc), w2, b2.reshape(1, gc),
      pwh, pwl, pb.reshape(1, cout))


# ----------------------------------------------------------------------------
# Kernel 5: low-frequency attention, all heads batched per grid step (grid=B),
# k pre-transposed at trace time so no in-kernel transpose is needed.
# ----------------------------------------------------------------------------
def _lf_attn_kernel(q_ref, k_ref, v_ref, o_ref, *, scalor):
    q = q_ref[0]                       # (gl, hw, dh)
    kt = k_ref[0]                      # (gl, dh, nkv)
    v = v_ref[0]                       # (gl, nkv, dh)
    s = scalor * jnp.einsum("gqd,gdk->gqk", q, kt,
                            preferred_element_type=jnp.float32)
    s = s - jnp.max(s, axis=-1, keepdims=True)
    p = jnp.exp(s)
    p = p / jnp.sum(p, axis=-1, keepdims=True)
    o_ref[0] = jnp.einsum("gqk,gkd->gqd", p, v,
                          preferred_element_type=jnp.float32).astype(o_ref.dtype)


def lf_attention(q, kt, v, scalor):
    # q: (B, G, HW, DH), kt: (B, G, DH, NKV), v: (B, G, NKV, DH)
    B, G, HW, DH = q.shape
    NK = kt.shape[-1]
    kern = functools.partial(_lf_attn_kernel, scalor=scalor)
    return pl.pallas_call(
        kern,
        out_shape=jax.ShapeDtypeStruct((B, G, HW, DH), q.dtype),
        grid=(B,),
        in_specs=[
            pl.BlockSpec((1, G, HW, DH), lambda i: (i, 0, 0, 0)),
            pl.BlockSpec((1, G, DH, NK), lambda i: (i, 0, 0, 0)),
            pl.BlockSpec((1, G, NK, DH), lambda i: (i, 0, 0, 0)),
        ],
        out_specs=pl.BlockSpec((1, G, HW, DH), lambda i: (i, 0, 0, 0)),
        compiler_params=pltpu.CompilerParams(dimension_semantics=("parallel",)),
    )(q, kt, v)


# ----------------------------------------------------------------------------
# Full forward (wrapper; reshapes/transposes/pooling are glue)
# ----------------------------------------------------------------------------
def efficient_attention_forward(x_nchw, params, *, num_heads=8,
                                group_split=(4, 4), kernel_sizes=(5,),
                                window_size=4):
    b, c, h, w = x_nchw.shape
    dim_head = c // num_heads
    scalor = dim_head ** -0.5
    gh = group_split[0]
    gc = gh * dim_head
    gl = group_split[-1]
    glc = gl * dim_head
    ksz = kernel_sizes[0]
    ws = window_size

    x = jnp.transpose(x_nchw, (0, 2, 3, 1)).astype(jnp.float32)      # NHWC
    xf = x.reshape(b * h * w, c)

    # ---- fused input projections (qkv for HF branch, q for LF branch) ----
    qkv, ql = fused_in_proj(xf, params["qkv_w"], params["qkv_b"],
                            params["gq_w"], params["gq_b"])           # (N,3gc),(N,glc)

    # ---- high-frequency branch: depthwise mixer (padding handled in VMEM) ----
    qkv = depthwise_conv(qkv.reshape(b, h, w, 3 * gc),
                         params["dw_w"], params["dw_b"], ksz)          # (b,h,w,3gc)
    qkv = qkv.reshape(b * h * w, 3 * gc)

    # ---- low-frequency branch ----
    qlr = ql.reshape(b, h * w, gl, dim_head).transpose(0, 2, 1, 3)     # (b,gl,hw,dh)
    pooled = x.reshape(b, h // ws, ws, w // ws, ws, c).mean(axis=(2, 4))
    npool = (h // ws) * (w // ws)
    kv = pointwise(pooled.reshape(b * npool, c),
                   params["gkv_w"], params["gkv_b"])                   # (bn, 2*glc)
    kv = kv.reshape(b, npool, 2, gl, dim_head)
    kl = kv[:, :, 0].transpose(0, 2, 3, 1)                             # (b,gl,dh,np)
    vl = kv[:, :, 1].transpose(0, 2, 1, 3)                             # (b,gl,np,dh)
    lf = lf_attention(qlr, kl, vl, scalor)                             # (b,gl,hw,dh)
    lf = lf.transpose(0, 2, 1, 3).reshape(b * h * w, glc)              # (N, glc)

    # ---- fused HF attention + concat + proj ----
    pwh = params["proj_w"][:gc, :]       # weight splits are trace-time constants
    pwl = params["proj_w"][gc:, :]
    out = hf_attn_proj(qkv, lf, params["am_w1"], params["am_b1"],
                       params["am_w2"], params["am_b2"],
                       pwh, pwl, params["proj_b"], gc, scalor)         # (N, c)
    out = out.reshape(b, h, w, c)
    return jnp.transpose(out, (0, 3, 1, 2))                            # back to NCHW


# ----------------------------------------------------------------------------
# Deterministic synthetic parameters (shapes match the PyTorch module)
# ----------------------------------------------------------------------------
def init_params(key, dim, num_heads, group_split, kernel_sizes):
    dim_head = dim // num_heads
    gc = group_split[0] * dim_head
    glc = group_split[-1] * dim_head
    ksz = kernel_sizes[0]
    ks = jax.random.split(key, 14)

    def lin(kk, cin, cout):
        return jax.random.normal(kk, (cin, cout), jnp.float32) * 0.1

    def bias(kk, cout):
        return jax.random.normal(kk, (cout,), jnp.float32) * 0.05

    return {
        "qkv_w": lin(ks[0], dim, 3 * gc), "qkv_b": bias(ks[1], 3 * gc),
        "dw_w": jax.random.normal(ks[2], (ksz, ksz, 3 * gc), jnp.float32) * 0.1,
        "dw_b": bias(ks[3], 3 * gc),
        "am_w1": lin(ks[4], gc, gc), "am_b1": bias(ks[5], gc),
        "am_w2": lin(ks[6], gc, gc), "am_b2": bias(ks[7], gc),
        "gq_w": lin(ks[8], dim, glc), "gq_b": bias(ks[9], glc),
        "gkv_w": lin(ks[10], dim, 2 * glc), "gkv_b": bias(ks[11], 2 * glc),
        "proj_w": lin(ks[12], dim, dim), "proj_b": bias(ks[13], dim),
    }


# ----------------------------------------------------------------------------
# Pure-JAX reference (mirrors the PyTorch forward) for a numerical check
# ----------------------------------------------------------------------------
def reference_forward(x_nchw, params, *, num_heads, group_split, kernel_sizes,
                      window_size):
    b, c, h, w = x_nchw.shape
    dim_head = c // num_heads
    scalor = dim_head ** -0.5
    x = jnp.transpose(x_nchw, (0, 2, 3, 1))
    xf = x.reshape(b * h * w, c)

    def pw(z, wt, bb):
        return jnp.dot(z, wt, precision="highest") + bb

    gc = group_split[0] * dim_head
    ksz = kernel_sizes[0]
    qkv = pw(xf, params["qkv_w"], params["qkv_b"]).reshape(b, h, w, 3 * gc)
    qkv = lax.conv_general_dilated(
        qkv, params["dw_w"].reshape(ksz, ksz, 1, 3 * gc), (1, 1), "SAME",
        dimension_numbers=("NHWC", "HWIO", "NHWC"),
        feature_group_count=3 * gc, precision=lax.Precision.HIGHEST,
    ) + params["dw_b"]
    qkv = qkv.reshape(b * h * w, 3 * gc)
    q, k, v = qkv[:, :gc], qkv[:, gc:2 * gc], qkv[:, 2 * gc:]
    t = pw(q * k, params["am_w1"], params["am_b1"])
    t = t * jax.nn.sigmoid(t)
    t = pw(t, params["am_w2"], params["am_b2"])
    hf = (jnp.tanh(t * scalor) * v).reshape(b, h, w, gc)

    gl = group_split[-1]
    glc = gl * dim_head
    ws = window_size
    ql = pw(xf, params["gq_w"], params["gq_b"]).reshape(
        b, h * w, gl, dim_head).transpose(0, 2, 1, 3)
    pooled = x.reshape(b, h // ws, ws, w // ws, ws, c).mean(axis=(2, 4))
    npool = (h // ws) * (w // ws)
    kv = pw(pooled.reshape(b * npool, c), params["gkv_w"],
            params["gkv_b"]).reshape(b, npool, 2, gl, dim_head)
    kl = kv[:, :, 0].transpose(0, 2, 1, 3)
    vl = kv[:, :, 1].transpose(0, 2, 1, 3)
    s = scalor * jnp.einsum("bgqd,bgkd->bgqk", ql, kl, precision="highest")
    p = jax.nn.softmax(s, axis=-1)
    lf = jnp.einsum("bgqk,bgkd->bgqd", p, vl, precision="highest")
    lf = lf.transpose(0, 2, 1, 3).reshape(b, h, w, glc)

    out = jnp.concatenate([hf, lf], axis=-1).reshape(b * h * w, c)
    out = pw(out, params["proj_w"], params["proj_b"]).reshape(b, h, w, c)
    return jnp.transpose(out, (0, 3, 1, 2))


if __name__ == "__main__":
    b, dim, h, w = 2, 32, 16, 16            # dim_head = 32 // 8 = 4
    num_heads, group_split = 8, (4, 4)
    kernel_sizes, window_size = (5,), 4

    key = jax.random.PRNGKey(0)
    kx, kp = jax.random.split(key)
    x = jax.random.normal(kx, (b, dim, h, w), jnp.float32)   # NCHW like PyTorch
    params = init_params(kp, dim, num_heads, group_split, kernel_sizes)

    out = efficient_attention_forward(
        x, params, num_heads=num_heads, group_split=group_split,
        kernel_sizes=kernel_sizes, window_size=window_size)
    out = jax.block_until_ready(out)
    assert out.shape == (b, dim, h, w)

    ref = reference_forward(
        x, params, num_heads=num_heads, group_split=group_split,
        kernel_sizes=kernel_sizes, window_size=window_size)
    max_err = float(jnp.max(jnp.abs(out - ref)))
    assert bool(jnp.allclose(out, ref, atol=5e-2, rtol=5e-2)), max_err

    print("KERNEL_OK")
</pallas_src>

<mosaic_0001>
module attributes {stable_mosaic.version = 11 : i64} {
  func.func @_in_proj_kernel(%arg0: i32, %arg1: memref<512x32xf32, #tpu.memory_space<vmem>>, %arg2: memref<32x48xf32, #tpu.memory_space<vmem>>, %arg3: memref<1x48xf32, #tpu.memory_space<vmem>>, %arg4: memref<32x16xf32, #tpu.memory_space<vmem>>, %arg5: memref<1x16xf32, #tpu.memory_space<vmem>>, %arg6: memref<512x48xf32, #tpu.memory_space<vmem>>, %arg7: memref<512x16xf32, #tpu.memory_space<vmem>>) attributes {dimension_semantics = [#tpu.dimension_semantics<parallel>], iteration_bounds = array<i64: 1>, scalar_prefetch = 0 : i64, scratch_operands = 0 : i64, tpu.core_type = #tpu.core_type<tc>, window_params = [{transform_indices = @transform_0, window_bounds = array<i64: 512, 32>}, {pipeline_mode = #tpu.pipeline_mode<synchronous>, transform_indices = @transform_1, window_bounds = array<i64: 32, 48>}, {pipeline_mode = #tpu.pipeline_mode<synchronous>, transform_indices = @transform_2, window_bounds = array<i64: 1, 48>}, {pipeline_mode = #tpu.pipeline_mode<synchronous>, transform_indices = @transform_3, window_bounds = array<i64: 32, 16>}, {pipeline_mode = #tpu.pipeline_mode<synchronous>, transform_indices = @transform_4, window_bounds = array<i64: 1, 16>}, {transform_indices = @transform_5, window_bounds = array<i64: 512, 48>}, {transform_indices = @transform_6, window_bounds = array<i64: 512, 16>}]} {
    %c0 = arith.constant 0 : index
    %c0_0 = arith.constant 0 : index
    %0 = vector.load %arg1[%c0, %c0_0] : memref<512x32xf32, #tpu.memory_space<vmem>>, vector<512x32xf32>
    %c0_1 = arith.constant 0 : index
    %c0_2 = arith.constant 0 : index
    %1 = vector.load %arg2[%c0_1, %c0_2] : memref<32x48xf32, #tpu.memory_space<vmem>>, vector<32x48xf32>
    %cst = arith.constant dense<0.000000e+00> : vector<512x48xf32>
    %2 = tpu.matmul %0, %1, %cst {dimension_numbers = #tpu.dot_dimension_numbers<[1], [0], [0], [1], [0, 0, 1, 1], [], []>} : vector<512x32xf32>, vector<32x48xf32>, vector<512x48xf32> -> vector<512x48xf32>
    %c0_3 = arith.constant 0 : index
    %c0_4 = arith.constant 0 : index
    %3 = vector.load %arg3[%c0_3, %c0_4] : memref<1x48xf32, #tpu.memory_space<vmem>>, vector<1x48xf32>
    %4 = vector.broadcast %3 : vector<1x48xf32> to vector<512x48xf32>
    %5 = arith.addf %2, %4 : vector<512x48xf32>
    %c0_5 = arith.constant 0 : index
    %c0_6 = arith.constant 0 : index
    %6 = vector.load %arg6[%c0_5, %c0_6] : memref<512x48xf32, #tpu.memory_space<vmem>>, vector<512x48xf32>
    tpu.vector_store %arg6[%c0_5, %c0_6], %5 {strides = array<i32>} : memref<512x48xf32, #tpu.memory_space<vmem>>, vector<512x48xf32>,
    %c0_7 = arith.constant 0 : index
    %c0_8 = arith.constant 0 : index
    %7 = vector.load %arg4[%c0_7, %c0_8] : memref<32x16xf32, #tpu.memory_space<vmem>>, vector<32x16xf32>
    %cst_9 = arith.constant dense<0.000000e+00> : vector<512x16xf32>
    %8 = tpu.matmul %0, %7, %cst_9 {dimension_numbers = #tpu.dot_dimension_numbers<[1], [0], [0], [1], [0, 0, 1, 1], [], []>} : vector<512x32xf32>, vector<32x16xf32>, vector<512x16xf32> -> vector<512x16xf32>
    %c0_10 = arith.constant 0 : index
    %c0_11 = arith.constant 0 : index
    %9 = vector.load %arg5[%c0_10, %c0_11] : memref<1x16xf32, #tpu.memory_space<vmem>>, vector<1x16xf32>
    %10 = vector.broadcast %9 : vector<1x16xf32> to vector<512x16xf32>
    %11 = arith.addf %8, %10 : vector<512x16xf32>
    %c0_12 = arith.constant 0 : index
    %c0_13 = arith.constant 0 : index
    %12 = vector.load %arg7[%c0_12, %c0_13] : memref<512x16xf32, #tpu.memory_space<vmem>>, vector<512x16xf32>
    tpu.vector_store %arg7[%c0_12, %c0_13], %11 {strides = array<i32>} : memref<512x16xf32, #tpu.memory_space<vmem>>, vector<512x16xf32>,
    return
  }
  func.func @transform_0(%arg0: i32) -> (i32, i32) {
    %c0_i32 = arith.constant 0 : i32
    %c0_i32_0 = arith.constant 0 : i32
    return %arg0, %c0_i32 : i32, i32
  }
  func.func @transform_1(%arg0: i32) -> (i32, i32) {
    %c0_i32 = arith.constant 0 : i32
    %c0_i32_0 = arith.constant 0 : i32
    %c0_i32_1 = arith.constant 0 : i32
    return %c0_i32, %c0_i32_0 : i32, i32
  }
  func.func @transform_2(%arg0: i32) -> (i32, i32) {
    %c0_i32 = arith.constant 0 : i32
    %c0_i32_0 = arith.constant 0 : i32
    %c0_i32_1 = arith.constant 0 : i32
    return %c0_i32, %c0_i32_0 : i32, i32
  }
  func.func @transform_3(%arg0: i32) -> (i32, i32) {
    %c0_i32 = arith.constant 0 : i32
    %c0_i32_0 = arith.constant 0 : i32
    %c0_i32_1 = arith.constant 0 : i32
    return %c0_i32, %c0_i32_0 : i32, i32
  }
  func.func @transform_4(%arg0: i32) -> (i32, i32) {
    %c0_i32 = arith.constant 0 : i32
    %c0_i32_0 = arith.constant 0 : i32
    %c0_i32_1 = arith.constant 0 : i32
    return %c0_i32, %c0_i32_0 : i32, i32
  }
  func.func @transform_5(%arg0: i32) -> (i32, i32) {
    %c0_i32 = arith.constant 0 : i32
    %c0_i32_0 = arith.constant 0 : i32
    return %arg0, %c0_i32 : i32, i32
  }
  func.func @transform_6(%arg0: i32) -> (i32, i32) {
    %c0_i32 = arith.constant 0 : i32
    %c0_i32_0 = arith.constant 0 : i32
    return %arg0, %c0_i32 : i32, i32
  }
}

</mosaic_0001>

<llo_original>
// kernel: tpu_custom_call.1
$region0: #{tpu_custom_call.1}
  #allocation0 [shape = 'u32[]', space=smem, size = 0x4, offset = 0x4, fixed_abs, tag = 'smem constant byte address 0x4 - core index']
  #allocation1 [shape = 'u32[144,128]{1,0:T(1,128)}', space=vmem, size = 0x12000, scoped, tag = 'internal scratch']
  %s0 = inlined_call_operand.vmem [shape: f32[512,32], index: 0, kind: input, shape index: {}]
  %s1 = inlined_call_operand.vmem [shape: f32[32,48], index: 1, kind: input, shape index: {}]
  %s2 = inlined_call_operand.vmem [shape: f32[1,48], index: 2, kind: input, shape index: {}]
  %s3 = inlined_call_operand.vmem [shape: f32[32,16], index: 3, kind: input, shape index: {}]
  %s4 = inlined_call_operand.vmem [shape: f32[1,16], index: 4, kind: input, shape index: {}]
  %s5 = inlined_call_operand.vmem [shape: f32[512,48], index: 5, kind: output, shape index: {0}]
  %s6 = inlined_call_operand.vmem [shape: f32[512,16], index: 6, kind: output, shape index: {1}]
  %7 = xla_tuple %s5, %s6
  %s8 = sld [smem:[#allocation0]]
  $region38: #{tpu_custom_call.1} parent=0
    _
  %s10 = ssub.s32 1, %s8
  %s11 = scalar_select 0, %s10, %s8
  // Predicated region
  $region2: #{tpu_custom_call.1} parent=0 // pred_check
    _
  $region3: #{tpu_custom_call.1} parent=0 // pred_check_branch
    %13 = sbr.rel (0) target = $region5
  $region4: #{tpu_custom_call.1} parent=0 // pred_region
    _
  $region5: #{tpu_custom_call.1} parent=0 // pred_fallthru
    _
  // Predicated region
  $region6: #{tpu_custom_call.1} parent=0 // pred_check
    _
  $region7: #{tpu_custom_call.1} parent=0 // pred_check_branch
    %15 = sbr.rel (0) target = $region9
  $region8: #{tpu_custom_call.1} parent=0 // pred_region
    _
  $region9: #{tpu_custom_call.1} parent=0 // pred_fallthru
    _
  // Predicated region
  $region10: #{tpu_custom_call.1} parent=0 // pred_check
    _
  $region11: #{tpu_custom_call.1} parent=0 // pred_check_branch
    %17 = sbr.rel (0) target = $region13
  $region12: #{tpu_custom_call.1} parent=0 // pred_region
    _
  $region13: #{tpu_custom_call.1} parent=0 // pred_fallthru
    _
  // Predicated region
  $region14: #{tpu_custom_call.1} parent=0 // pred_check
    _
  $region15: #{tpu_custom_call.1} parent=0 // pred_check_branch
    %19 = sbr.rel (0) target = $region17
  $region16: #{tpu_custom_call.1} parent=0 // pred_region
    _
  $region17: #{tpu_custom_call.1} parent=0 // pred_fallthru
    _
  // Predicated region
  $region18: #{tpu_custom_call.1} parent=0 // pred_check
    _
  $region19: #{tpu_custom_call.1} parent=0 // pred_check_branch
    %21 = sbr.rel (0) target = $region21
  $region20: #{tpu_custom_call.1} parent=0 // pred_region
    _
  $region21: #{tpu_custom_call.1} parent=0 // pred_fallthru
    _
  %v22 = vld [vmem:[%s0] sm:$0xff]
  %v23 = vld [vmem:[%s0 + $0x8] sm:$0xff]
  %v24 = vld [vmem:[%s0 + $0x10] sm:$0xff]
  %v25 = vld [vmem:[%s0 + $0x18] sm:$0xff]
  %v26 = vld [vmem:[%s0 + $0x20] sm:$0xff]
  %v27 = vld [vmem:[%s0 + $0x28] sm:$0xff]
  %v28 = vld [vmem:[%s0 + $0x30] sm:$0xff]
  %v29 = vld [vmem:[%s0 + $0x38] sm:$0xff]
  %v30 = vld [vmem:[%s0 + $0x40] sm:$0xff]
  %v31 = vld [vmem:[%s0 + $0x48] sm:$0xff]
  %v32 = vld [vmem:[%s0 + $0x50] sm:$0xff]
  %v33 = vld [vmem:[%s0 + $0x58] sm:$0xff]
  %v34 = vld [vmem:[%s0 + $0x60] sm:$0xff]
  %v35 = vld [vmem:[%s0 + $0x68] sm:$0xff]
  %v36 = vld [vmem:[%s0 + $0x70] sm:$0xff]
  %v37 = vld [vmem:[%s0 + $0x78] sm:$0xff]
  %v38 = vld [vmem:[%s0 + $0x80] sm:$0xff]
  %v39 = vld [vmem:[%s0 + $0x88] sm:$0xff]
  %v40 = vld [vmem:[%s0 + $0x90] sm:$0xff]
  %v41 = vld [vmem:[%s0 + $0x98] sm:$0xff]
  %v42 = vld [vmem:[%s0 + $0xa0] sm:$0xff]
  %v43 = vld [vmem:[%s0 + $0xa8] sm:$0xff]
  %v44 = vld [vmem:[%s0 + $0xb0] sm:$0xff]
  %v45 = vld [vmem:[%s0 + $0xb8] sm:$0xff]
  %v46 = vld [vmem:[%s0 + $0xc0] sm:$0xff]
  %v47 = vld [vmem:[%s0 + $0xc8] sm:$0xff]
  %v48 = vld [vmem:[%s0 + $0xd0] sm:$0xff]
  %v49 = vld [vmem:[%s0 + $0xd8] sm:$0xff]
  %v50 = vld [vmem:[%s0 + $0xe0] sm:$0xff]
  %v51 = vld [vmem:[%s0 + $0xe8] sm:$0xff]
  %v52 = vld [vmem:[%s0 + $0xf0] sm:$0xff]
  %v53 = vld [vmem:[%s0 + $0xf8] sm:$0xff]
  %v54 = vld [vmem:[%s0 + $0x100] sm:$0xff]
  %v55 = vld [vmem:[%s0 + $0x108] sm:$0xff]
  %v56 = vld [vmem:[%s0 + $0x110] sm:$0xff]
  %v57 = vld [vmem:[%s0 + $0x118] sm:$0xff]
  %v58 = vld [vmem:[%s0 + $0x120] sm:$0xff]
  %v59 = vld [vmem:[%s0 + $0x128] sm:$0xff]
  %v60 = vld [vmem:[%s0 + $0x130] sm:$0xff]
  %v61 = vld [vmem:[%s0 + $0x138] sm:$0xff]
  %v62 = vld [vmem:[%s0 + $0x140] sm:$0xff]
  %v63 = vld [vmem:[%s0 + $0x148] sm:$0xff]
  %v64 = vld [vmem:[%s0 + $0x150] sm:$0xff]
  %v65 = vld [vmem:[%s0 + $0x158] sm:$0xff]
  %v66 = vld [vmem:[%s0 + $0x160] sm:$0xff]
  %v67 = vld [vmem:[%s0 + $0x168] sm:$0xff]
  %v68 = vld [vmem:[%s0 + $0x170] sm:$0xff]
  %v69 = vld [vmem:[%s0 + $0x178] sm:$0xff]
  %v70 = vld [vmem:[%s0 + $0x180] sm:$0xff]
  %v71 = vld [vmem:[%s0 + $0x188] sm:$0xff]
  %v72 = vld [vmem:[%s0 + $0x190] sm:$0xff]
  %v73 = vld [vmem:[%s0 + $0x198] sm:$0xff]
  %v74 = vld [vmem:[%s0 + $0x1a0] sm:$0xff]
  %v75 = vld [vmem:[%s0 + $0x1a8] sm:$0xff]
  %v76 = vld [vmem:[%s0 + $0x1b0] sm:$0xff]
  %v77 = vld [vmem:[%s0 + $0x1b8] sm:$0xff]
  %v78 = vld [vmem:[%s0 + $0x1c0] sm:$0xff]
  %v79 = vld [vmem:[%s0 + $0x1c8] sm:$0xff]
  %v80 = vld [vmem:[%s0 + $0x1d0] sm:$0xff]
  %v81 = vld [vmem:[%s0 + $0x1d8] sm:$0xff]
  %v82 = vld [vmem:[%s0 + $0x1e0] sm:$0xff]
  %v83 = vld [vmem:[%s0 + $0x1e8] sm:$0xff]
  %v84 = vld [vmem:[%s0 + $0x1f0] sm:$0xff]
  %v85 = vld [vmem:[%s0 + $0x1f8] sm:$0xff]
  %v86 = vld [vmem:[%s1] sm:$0xff]
  %v87 = vld [vmem:[%s1 + $0x8] sm:$0xff]
  %v88 = vld [vmem:[%s1 + $0x10] sm:$0xff]
  %v89 = vld [vmem:[%s1 + $0x18] sm:$0xff]
  %v90 = vld [vmem:[%s2] sm:$0x1]
  %v92 = vlaneseq
  %v93 = vshrl.u32 %v92, 7
  %v94 = vsub.s32 0, %v93
  %v95 = vrot.slane %v90, %v94
  %vm97 = vcmask 261120
  %v99 = vsel %vm97, %v22, 0
  %v102 = vsel %vm97, %v23, 0
  %v105 = vsel %vm97, %v24, 0
  %v108 = vsel %vm97, %v25, 0
  %v111 = vsel %vm97, %v26, 0
  %v114 = vsel %vm97, %v27, 0
  %v117 = vsel %vm97, %v28, 0
  %v120 = vsel %vm97, %v29, 0
  %v123 = vsel %vm97, %v30, 0
  %v126 = vsel %vm97, %v31, 0
  %v129 = vsel %vm97, %v32, 0
  %v132 = vsel %vm97, %v33, 0
  %v135 = vsel %vm97, %v34, 0
  %v138 = vsel %vm97, %v35, 0
  %v141 = vsel %vm97, %v36, 0
  %v144 = vsel %vm97, %v37, 0
  %v147 = vsel %vm97, %v38, 0
  %v150 = vsel %vm97, %v39, 0
  %v153 = vsel %vm97, %v40, 0
  %v156 = vsel %vm97, %v41, 0
  %v159 = vsel %vm97, %v42, 0
  %v162 = vsel %vm97, %v43, 0
  %v165 = vsel %vm97, %v44, 0
  %v168 = vsel %vm97, %v45, 0
  %v171 = vsel %vm97, %v46, 0
  %v174 = vsel %vm97, %v47, 0
  %v177 = vsel %vm97, %v48, 0
  %v180 = vsel %vm97, %v49, 0
  %v183 = vsel %vm97, %v50, 0
  %v186 = vsel %vm97, %v51, 0
  %v189 = vsel %vm97, %v52, 0
  %v192 = vsel %vm97, %v53, 0
  %v195 = vsel %vm97, %v54, 0
  %v198 = vsel %vm97, %v55, 0
  %v201 = vsel %vm97, %v56, 0
  %v204 = vsel %vm97, %v57, 0
  %v207 = vsel %vm97, %v58, 0
  %v210 = vsel %vm97, %v59, 0
  %v213 = vsel %vm97, %v60, 0
  %v216 = vsel %vm97, %v61, 0
  %v219 = vsel %vm97, %v62, 0
  %v222 = vsel %vm97, %v63, 0
  %v225 = vsel %vm97, %v64, 0
  %v228 = vsel %vm97, %v65, 0
  %v231 = vsel %vm97, %v66, 0
  %v234 = vsel %vm97, %v67, 0
  %v237 = vsel %vm97, %v68, 0
  %v240 = vsel %vm97, %v69, 0
  %v243 = vsel %vm97, %v70, 0
  %v246 = vsel %vm97, %v71, 0
  %v249 = vsel %vm97, %v72, 0
  %v252 = vsel %vm97, %v73, 0
  %v255 = vsel %vm97, %v74, 0
  %v258 = vsel %vm97, %v75, 0
  %v261 = vsel %vm97, %v76, 0
  %v264 = vsel %vm97, %v77, 0
  %v267 = vsel %vm97, %v78, 0
  %v270 = vsel %vm97, %v79, 0
  %v273 = vsel %vm97, %v80, 0
  %v276 = vsel %vm97, %v81, 0
  %v279 = vsel %vm97, %v82, 0
  %v282 = vsel %vm97, %v83, 0
  %v285 = vsel %vm97, %v84, 0
  %v288 = vsel %vm97, %v85, 0
  %290 = vmatprep.subr.mxu0 0.0
  %291 = vmatpush1.msra.mxu0 0.0
  %292 = vmatprep.subr.mxu0 0.0
  %293 = vmatpush1.msra.mxu0 0.0
  %294 = vmatprep.subr.mxu0 0.0
  %295 = vmatpush1.msra.mxu0 0.0
  %296 = vmatprep.subr.mxu0 0.0
  %297 = vmatpush1.msra.mxu0 0.0
  %298 = vmatprep.subr.mxu0 0.0
  %299 = vmatpush1.msra.mxu0 0.0
  %300 = vmatprep.subr.mxu0 0.0
  %301 = vmatpush1.msra.mxu0 0.0
  %302 = vmatprep.subr.mxu0 0.0
  %303 = vmatpush1.msra.mxu0 0.0
  %304 = vmatprep.subr.mxu0 0.0
  %305 = vmatpush1.msra.mxu0 0.0
  %306 = vmatprep.subr.mxu0 0.0
  %307 = vmatpush1.msra.mxu0 0.0
  %308 = vmatprep.subr.mxu0 0.0
  %309 = vmatpush1.msra.mxu0 0.0
  %310 = vmatprep.subr.mxu0 0.0
  %311 = vmatpush1.msra.mxu0 0.0
  %312 = vmatprep.subr.mxu0 0.0
  %313 = vmatpush1.msra.mxu0 0.0
  %314 = vmatprep.subr.mxu0 0.0
  %315 = vmatpush1.msra.mxu0 %v89
  %316 = vmatprep.subr.mxu0 0.0
  %317 = vmatpush1.msra.mxu0 %v88
  %318 = vmatprep.subr.mxu0 0.0
  %319 = vmatpush1.msra.mxu0 %v87
  %320 = vmatprep.subr.mxu0 0.0
  %321 = vmatpush1.msra.mxu0 %v86
  %322 = vmatprep.subr.mxu0 0.0
  %323 = vmatpush2.msra.mxu0 0.0
  %324 = vmatprep.subr.mxu0 0.0
  %325 = vmatpush2.msra.mxu0 0.0
  %326 = vmatprep.subr.mxu0 0.0
  %327 = vmatpush2.msra.mxu0 0.0
  %328 = vmatprep.subr.mxu0 0.0
  %329 = vmatpush2.msra.mxu0 0.0
  %330 = vmatprep.subr.mxu0 0.0
  %331 = vmatpush2.msra.mxu0 0.0
  %332 = vmatprep.subr.mxu0 0.0
  %333 = vmatpush2.msra.mxu0 0.0
  %334 = vmatprep.subr.mxu0 0.0
  %335 = vmatpush2.msra.mxu0 0.0
  %336 = vmatprep.subr.mxu0 0.0
  %337 = vmatpush2.msra.mxu0 0.0
  %338 = vmatprep.subr.mxu0 0.0
  %339 = vmatpush2.msra.mxu0 0.0
  %340 = vmatprep.subr.mxu0 0.0
  %341 = vmatpush2.msra.mxu0 0.0
  %342 = vmatprep.subr.mxu0 0.0
  %343 = vmatpush2.msra.mxu0 0.0
  %344 = vmatprep.subr.mxu0 0.0
  %345 = vmatpush2.msra.mxu0 0.0
  %346 = vmatprep.subr.mxu0 0.0
  %347 = vmatpush2.msra.mxu0 0.0
  %348 = vmatprep.subr.mxu0 0.0
  %349 = vmatpush2.msra.mxu0 0.0
  %350 = vmatprep.subr.mxu0 0.0
  %351 = vmatpush2.msra.mxu0 0.0
  %352 = vmatprep.subr.mxu0 0.0
  %353 = vmatpush2.msra.mxu0 0.0
  %354 = vmatprep.mubr.f32.mxu0 0.0
  %355 = vmatmul.mubr.f32.gmra.mxu0 %v99
  %v356 = vpop.f32.mrf.mxu0
  %v357 = vadd.f32 %v95, %v356
  %v358 = vpop.f32.mrf.mxu0
  %359 = vmatprep.mubr.f32.mxu0 0.0
  %360 = vmatmul.mubr.f32.gmra.mxu0 %v102
  %v361 = vpop.f32.mrf.mxu0
  %v362 = vadd.f32 %v95, %v361
  %v363 = vpop.f32.mrf.mxu0
  %364 = vmatprep.mubr.f32.mxu0 0.0
  %365 = vmatmul.mubr.f32.gmra.mxu0 %v105
  %v366 = vpop.f32.mrf.mxu0
  %v367 = vadd.f32 %v95, %v366
  %v368 = vpop.f32.mrf.mxu0
  %369 = vmatprep.mubr.f32.mxu0 0.0
  %370 = vmatmul.mubr.f32.gmra.mxu0 %v108
  %v371 = vpop.f32.mrf.mxu0
  %v372 = vadd.f32 %v95, %v371
  %v373 = vpop.f32.mrf.mxu0
  %374 = vmatprep.mubr.f32.mxu0 0.0
  %375 = vmatmul.mubr.f32.gmra.mxu0 %v111
  %v376 = vpop.f32.mrf.mxu0
  %v377 = vadd.f32 %v95, %v376
  %v378 = vpop.f32.mrf.mxu0
  %379 = vmatprep.mubr.f32.mxu0 0.0
  %380 = vmatmul.mubr.f32.gmra.mxu0 %v114
  %v381 = vpop.f32.mrf.mxu0
  %v382 = vadd.f32 %v95, %v381
  %v383 = vpop.f32.mrf.mxu0
  %384 = vmatprep.mubr.f32.mxu0 0.0
  %385 = vmatmul.mubr.f32.gmra.mxu0 %v117
  %v386 = vpop.f32.mrf.mxu0
  %v387 = vadd.f32 %v95, %v386
  %v388 = vpop.f32.mrf.mxu0
  %389 = vmatprep.mubr.f32.mxu0 0.0
  %390 = vmatmul.mubr.f32.gmra.mxu0 %v120
  %v391 = vpop.f32.mrf.mxu0
  %v392 = vadd.f32 %v95, %v391
  %v393 = vpop.f32.mrf.mxu0
  %394 = vmatprep.mubr.f32.mxu0 0.0
  %395 = vmatmul.mubr.f32.gmra.mxu0 %v123
  %v396 = vpop.f32.mrf.mxu0
  %v397 = vadd.f32 %v95, %v396
  %v398 = vpop.f32.mrf.mxu0
  %399 = vmatprep.mubr.f32.mxu0 0.0
  %400 = vmatmul.mubr.f32.gmra.mxu0 %v126
  %v401 = vpop.f32.mrf.mxu0
  %v402 = vadd.f32 %v95, %v401
  %v403 = vpop.f32.mrf.mxu0
  %404 = vmatprep.mubr.f32.mxu0 0.0
  %405 = vmatmul.mubr.f32.gmra.mxu0 %v129
  %v406 = vpop.f32.mrf.mxu0
  %v407 = vadd.f32 %v95, %v406
  %v408 = vpop.f32.mrf.mxu0
  %409 = vmatprep.mubr.f32.mxu0 0.0
  %410 = vmatmul.mubr.f32.gmra.mxu0 %v132
  %v411 = vpop.f32.mrf.mxu0
  %v412 = vadd.f32 %v95, %v411
  %v413 = vpop.f32.mrf.mxu0
  %414 = vmatprep.mubr.f32.mxu0 0.0
  %415 = vmatmul.mubr.f32.gmra.mxu0 %v135
  %v416 = vpop.f32.mrf.mxu0
  %v417 = vadd.f32 %v95, %v416
  %v418 = vpop.f32.mrf.mxu0
  %419 = vmatprep.mubr.f32.mxu0 0.0
  %420 = vmatmul.mubr.f32.gmra.mxu0 %v138
  %v421 = vpop.f32.mrf.mxu0
  %v422 = vadd.f32 %v95, %v421
  %v423 = vpop.f32.mrf.mxu0
  %424 = vmatprep.mubr.f32.mxu0 0.0
  %425 = vmatmul.mubr.f32.gmra.mxu0 %v141
  %v426 = vpop.f32.mrf.mxu0
  %v427 = vadd.f32 %v95, %v426
  %v428 = vpop.f32.mrf.mxu0
  %429 = vmatprep.mubr.f32.mxu0 0.0
  %430 = vmatmul.mubr.f32.gmra.mxu0 %v144
  %v431 = vpop.f32.mrf.mxu0
  %v432 = vadd.f32 %v95, %v431
  %v433 = vpop.f32.mrf.mxu0
  %434 = vmatprep.mubr.f32.mxu0 0.0
  %435 = vmatmul.mubr.f32.gmra.mxu0 %v147
  %v436 = vpop.f32.mrf.mxu0
  %v437 = vadd.f32 %v95, %v436
  %v438 = vpop.f32.mrf.mxu0
  %439 = vmatprep.mubr.f32.mxu0 0.0
  %440 = vmatmul.mubr.f32.gmra.mxu0 %v150
  %v441 = vpop.f32.mrf.mxu0
  %v442 = vadd.f32 %v95, %v441
  %v443 = vpop.f32.mrf.mxu0
  %444 = vmatprep.mubr.f32.mxu0 0.0
  %445 = vmatmul.mubr.f32.gmra.mxu0 %v153
  %v446 = vpop.f32.mrf.mxu0
  %v447 = vadd.f32 %v95, %v446
  %v448 = vpop.f32.mrf.mxu0
  %449 = vmatprep.mubr.f32.mxu0 0.0
  %450 = vmatmul.mubr.f32.gmra.mxu0 %v156
  %v451 = vpop.f32.mrf.mxu0
  %v452 = vadd.f32 %v95, %v451
  %v453 = vpop.f32.mrf.mxu0
  %454 = vmatprep.mubr.f32.mxu0 0.0
  %455 = vmatmul.mubr.f32.gmra.mxu0 %v159
  %v456 = vpop.f32.mrf.mxu0
  %v457 = vadd.f32 %v95, %v456
  %v458 = vpop.f32.mrf.mxu0
  %459 = vmatprep.mubr.f32.mxu0 0.0
  %460 = vmatmul.mubr.f32.gmra.mxu0 %v162
  %v461 = vpop.f32.mrf.mxu0
  %v462 = vadd.f32 %v95, %v461
  %v463 = vpop.f32.mrf.mxu0
  %464 = vmatprep.mubr.f32.mxu0 0.0
  %465 = vmatmul.mubr.f32.gmra.mxu0 %v165
  %v466 = vpop.f32.mrf.mxu0
  %v467 = vadd.f32 %v95, %v466
  %v468 = vpop.f32.mrf.mxu0
  %469 = vmatprep.mubr.f32.mxu0 0.0
  %470 = vmatmul.mubr.f32.gmra.mxu0 %v168
  %v471 = vpop.f32.mrf.mxu0
  %v472 = vadd.f32 %v95, %v471
  %v473 = vpop.f32.mrf.mxu0
  %474 = vmatprep.mubr.f32.mxu0 0.0
  %475 = vmatmul.mubr.f32.gmra.mxu0 %v171
  %v476 = vpop.f32.mrf.mxu0
  %v477 = vadd.f32 %v95, %v476
  %v478 = vpop.f32.mrf.mxu0
  %479 = vmatprep.mubr.f32.mxu0 0.0
  %480 = vmatmul.mubr.f32.gmra.mxu0 %v174
  %v481 = vpop.f32.mrf.mxu0
  %v482 = vadd.f32 %v95, %v481
  %v483 = vpop.f32.mrf.mxu0
  %484 = vmatprep.mubr.f32.mxu0 0.0
  %485 = vmatmul.mubr.f32.gmra.mxu0 %v177
  %v486 = vpop.f32.mrf.mxu0
  %v487 = vadd.f32 %v95, %v486
  %v488 = vpop.f32.mrf.mxu0
  %489 = vmatprep.mubr.f32.mxu0 0.0
  %490 = vmatmul.mubr.f32.gmra.mxu0 %v180
  %v491 = vpop.f32.mrf.mxu0
  %v492 = vadd.f32 %v95, %v491
  %v493 = vpop.f32.mrf.mxu0
  %494 = vmatprep.mubr.f32.mxu0 0.0
  %495 = vmatmul.mubr.f32.gmra.mxu0 %v183
  %v496 = vpop.f32.mrf.mxu0
  %v497 = vadd.f32 %v95, %v496
  %v498 = vpop.f32.mrf.mxu0
  %499 = vmatprep.mubr.f32.mxu0 0.0
  %500 = vmatmul.mubr.f32.gmra.mxu0 %v186
  %v501 = vpop.f32.mrf.mxu0
  %v502 = vadd.f32 %v95, %v501
  %v503 = vpop.f32.mrf.mxu0
  %504 = vmatprep.mubr.f32.mxu0 0.0
  %505 = vmatmul.mubr.f32.gmra.mxu0 %v189
  %v506 = vpop.f32.mrf.mxu0
  %v507 = vadd.f32 %v95, %v506
  %v508 = vpop.f32.mrf.mxu0
  %509 = vmatprep.mubr.f32.mxu0 0.0
  %510 = vmatmul.mubr.f32.gmra.mxu0 %v192
  %v511 = vpop.f32.mrf.mxu0
  %v512 = vadd.f32 %v95, %v511
  %v513 = vpop.f32.mrf.mxu0
  %514 = vmatprep.mubr.f32.mxu0 0.0
  %515 = vmatmul.mubr.f32.gmra.mxu0 %v195
  %v516 = vpop.f32.mrf.mxu0
  %v517 = vadd.f32 %v95, %v516
  %v518 = vpop.f32.mrf.mxu0
  %519 = vmatprep.mubr.f32.mxu0 0.0
  %520 = vmatmul.mubr.f32.gmra.mxu0 %v198
  %v521 = vpop.f32.mrf.mxu0
  %v522 = vadd.f32 %v95, %v521
  %v523 = vpop.f32.mrf.mxu0
  %524 = vmatprep.mubr.f32.mxu0 0.0
  %525 = vmatmul.mubr.f32.gmra.mxu0 %v201
  %v526 = vpop.f32.mrf.mxu0
  %v527 = vadd.f32 %v95, %v526
  %v528 = vpop.f32.mrf.mxu0
  %529 = vmatprep.mubr.f32.mxu0 0.0
  %530 = vmatmul.mubr.f32.gmra.mxu0 %v204
  %v531 = vpop.f32.mrf.mxu0
  %v532 = vadd.f32 %v95, %v531
  %v533 = vpop.f32.mrf.mxu0
  %534 = vmatprep.mubr.f32.mxu0 0.0
  %535 = vmatmul.mubr.f32.gmra.mxu0 %v207
  %v536 = vpop.f32.mrf.mxu0
  %v537 = vadd.f32 %v95, %v536
  %v538 = vpop.f32.mrf.mxu0
  %539 = vmatprep.mubr.f32.mxu0 0.0
  %540 = vmatmul.mubr.f32.gmra.mxu0 %v210
  %v541 = vpop.f32.mrf.mxu0
  %v542 = vadd.f32 %v95, %v541
  %v543 = vpop.f32.mrf.mxu0
  %544 = vmatprep.mubr.f32.mxu0 0.0
  %545 = vmatmul.mubr.f32.gmra.mxu0 %v213
  %v546 = vpop.f32.mrf.mxu0
  %v547 = vadd.f32 %v95, %v546
  %v548 = vpop.f32.mrf.mxu0
  %549 = vmatprep.mubr.f32.mxu0 0.0
  %550 = vmatmul.mubr.f32.gmra.mxu0 %v216
  %v551 = vpop.f32.mrf.mxu0
  %v552 = vadd.f32 %v95, %v551
  %v553 = vpop.f32.mrf.mxu0
  %554 = vmatprep.mubr.f32.mxu0 0.0
  %555 = vmatmul.mubr.f32.gmra.mxu0 %v219
  %v556 = vpop.f32.mrf.mxu0
  %v557 = vadd.f32 %v95, %v556
  %v558 = vpop.f32.mrf.mxu0
  %559 = vmatprep.mubr.f32.mxu0 0.0
  %560 = vmatmul.mubr.f32.gmra.mxu0 %v222
  %v561 = vpop.f32.mrf.mxu0
  %v562 = vadd.f32 %v95, %v561
  %v563 = vpop.f32.mrf.mxu0
  %564 = vmatprep.mubr.f32.mxu0 0.0
  %565 = vmatmul.mubr.f32.gmra.mxu0 %v225
  %v566 = vpop.f32.mrf.mxu0
  %v567 = vadd.f32 %v95, %v566
  %v568 = vpop.f32.mrf.mxu0
  %569 = vmatprep.mubr.f32.mxu0 0.0
  %570 = vmatmul.mubr.f32.gmra.mxu0 %v228
  %v571 = vpop.f32.mrf.mxu0
  %v572 = vadd.f32 %v95, %v571
  %v573 = vpop.f32.mrf.mxu0
  %574 = vmatprep.mubr.f32.mxu0 0.0
  %575 = vmatmul.mubr.f32.gmra.mxu0 %v231
  %v576 = vpop.f32.mrf.mxu0
  %v577 = vadd.f32 %v95, %v576
  %v578 = vpop.f32.mrf.mxu0
  %579 = vmatprep.mubr.f32.mxu0 0.0
  %580 = vmatmul.mubr.f32.gmra.mxu0 %v234
  %v581 = vpop.f32.mrf.mxu0
  %v582 = vadd.f32 %v95, %v581
  %v583 = vpop.f32.mrf.mxu0
  %584 = vmatprep.mubr.f32.mxu0 0.0
  %585 = vmatmul.mubr.f32.gmra.mxu0 %v237
  %v586 = vpop.f32.mrf.mxu0
  %v587 = vadd.f32 %v95, %v586
  %v588 = vpop.f32.mrf.mxu0
  %589 = vmatprep.mubr.f32.mxu0 0.0
  %590 = vmatmul.mubr.f32.gmra.mxu0 %v240
  %v591 = vpop.f32.mrf.mxu0
  %v592 = vadd.f32 %v95, %v591
  %v593 = vpop.f32.mrf.mxu0
  %594 = vmatprep.mubr.f32.mxu0 0.0
  %595 = vmatmul.mubr.f32.gmra.mxu0 %v243
  %v596 = vpop.f32.mrf.mxu0
  %v597 = vadd.f32 %v95, %v596
  %v598 = vpop.f32.mrf.mxu0
  %599 = vmatprep.mubr.f32.mxu0 0.0
  %600 = vmatmul.mubr.f32.gmra.mxu0 %v246
  %v601 = vpop.f32.mrf.mxu0
  %v602 = vadd.f32 %v95, %v601
  %v603 = vpop.f32.mrf.mxu0
  %604 = vmatprep.mubr.f32.mxu0 0.0
  %605 = vmatmul.mubr.f32.gmra.mxu0 %v249
  %v606 = vpop.f32.mrf.mxu0
  %v607 = vadd.f32 %v95, %v606
  %v608 = vpop.f32.mrf.mxu0
  %609 = vmatprep.mubr.f32.mxu0 0.0
  %610 = vmatmul.mubr.f32.gmra.mxu0 %v252
  %v611 = vpop.f32.mrf.mxu0
  %v612 = vadd.f32 %v95, %v611
  %v613 = vpop.f32.mrf.mxu0
  %614 = vmatprep.mubr.f32.mxu0 0.0
  %615 = vmatmul.mubr.f32.gmra.mxu0 %v255
  %v616 = vpop.f32.mrf.mxu0
  %v617 = vadd.f32 %v95, %v616
  %v618 = vpop.f32.mrf.mxu0
  %619 = vmatprep.mubr.f32.mxu0 0.0
  %620 = vmatmul.mubr.f32.gmra.mxu0 %v258
  %v621 = vpop.f32.mrf.mxu0
  %v622 = vadd.f32 %v95, %v621
  %v623 = vpop.f32.mrf.mxu0
  %624 = vmatprep.mubr.f32.mxu0 0.0
  %625 = vmatmul.mubr.f32.gmra.mxu0 %v261
  %v626 = vpop.f32.mrf.mxu0
  %v627 = vadd.f32 %v95, %v626
  %v628 = vpop.f32.mrf.mxu0
  %629 = vmatprep.mubr.f32.mxu0 0.0
  %630 = vmatmul.mubr.f32.gmra.mxu0 %v264
  %v631 = vpop.f32.mrf.mxu0
  %v632 = vadd.f32 %v95, %v631
  %v633 = vpop.f32.mrf.mxu0
  %634 = vmatprep.mubr.f32.mxu0 0.0
  %635 = vmatmul.mubr.f32.gmra.mxu0 %v267
  %v636 = vpop.f32.mrf.mxu0
  %v637 = vadd.f32 %v95, %v636
  %v638 = vpop.f32.mrf.mxu0
  %639 = vmatprep.mubr.f32.mxu0 0.0
  %640 = vmatmul.mubr.f32.gmra.mxu0 %v270
  %v641 = vpop.f32.mrf.mxu0
  %v642 = vadd.f32 %v95, %v641
  %v643 = vpop.f32.mrf.mxu0
  %644 = vmatprep.mubr.f32.mxu0 0.0
  %645 = vmatmul.mubr.f32.gmra.mxu0 %v273
  %v646 = vpop.f32.mrf.mxu0
  %v647 = vadd.f32 %v95, %v646
  %v648 = vpop.f32.mrf.mxu0
  %649 = vmatprep.mubr.f32.mxu0 0.0
  %650 = vmatmul.mubr.f32.gmra.mxu0 %v276
  %v651 = vpop.f32.mrf.mxu0
  %v652 = vadd.f32 %v95, %v651
  %v653 = vpop.f32.mrf.mxu0
  %654 = vmatprep.mubr.f32.mxu0 0.0
  %655 = vmatmul.mubr.f32.gmra.mxu0 %v279
  %v656 = vpop.f32.mrf.mxu0
  %v657 = vadd.f32 %v95, %v656
  %v658 = vpop.f32.mrf.mxu0
  %659 = vmatprep.mubr.f32.mxu0 0.0
  %660 = vmatmul.mubr.f32.gmra.mxu0 %v282
  %v661 = vpop.f32.mrf.mxu0
  %v662 = vadd.f32 %v95, %v661
  %v663 = vpop.f32.mrf.mxu0
  %664 = vmatprep.mubr.f32.mxu0 0.0
  %665 = vmatmul.mubr.f32.gmra.mxu0 %v285
  %v666 = vpop.f32.mrf.mxu0
  %v667 = vadd.f32 %v95, %v666
  %v668 = vpop.f32.mrf.mxu0
  %669 = vmatprep.mubr.f32.mxu0 0.0
  %670 = vmatmul.mubr.f32.gmra.mxu0 %v288
  %v671 = vpop.f32.mrf.mxu0
  %v672 = vadd.f32 %v95, %v671
  %v673 = vpop.f32.mrf.mxu0
  %674 = vdwg.mxu0
  %vm675 = vcmask 392192
  %676 = vst.msk [vmem:[%s5] sm:$0xff] %vm675, %v357
  %677 = vst.msk [vmem:[%s5 + $0x8] sm:$0xff] %vm675, %v362
  %678 = vst.msk [vmem:[%s5 + $0x10] sm:$0xff] %vm675, %v367
  %679 = vst.msk [vmem:[%s5 + $0x18] sm:$0xff] %vm675, %v372
  %680 = vst.msk [vmem:[%s5 + $0x20] sm:$0xff] %vm675, %v377
  %681 = vst.msk [vmem:[%s5 + $0x28] sm:$0xff] %vm675, %v382
  %682 = vst.msk [vmem:[%s5 + $0x30] sm:$0xff] %vm675, %v387
  %683 = vst.msk [vmem:[%s5 + $0x38] sm:$0xff] %vm675, %v392
  %684 = vst.msk [vmem:[%s5 + $0x40] sm:$0xff] %vm675, %v397
  %685 = vst.msk [vmem:[%s5 + $0x48] sm:$0xff] %vm675, %v402
  %686 = vst.msk [vmem:[%s5 + $0x50] sm:$0xff] %vm675, %v407
  %687 = vst.msk [vmem:[%s5 + $0x58] sm:$0xff] %vm675, %v412
  %688 = vst.msk [vmem:[%s5 + $0x60] sm:$0xff] %vm675, %v417
  %689 = vst.msk [vmem:[%s5 + $0x68] sm:$0xff] %vm675, %v422
  %690 = vst.msk [vmem:[%s5 + $0x70] sm:$0xff] %vm675, %v427
  %691 = vst.msk [vmem:[%s5 + $0x78] sm:$0xff] %vm675, %v432
  %692 = vst.msk [vmem:[%s5 + $0x80] sm:$0xff] %vm675, %v437
  %693 = vst.msk [vmem:[%s5 + $0x88] sm:$0xff] %vm675, %v442
  %694 = vst.msk [vmem:[%s5 + $0x90] sm:$0xff] %vm675, %v447
  %695 = vst.msk [vmem:[%s5 + $0x98] sm:$0xff] %vm675, %v452
  %696 = vst.msk [vmem:[%s5 + $0xa0] sm:$0xff] %vm675, %v457
  %697 = vst.msk [vmem:[%s5 + $0xa8] sm:$0xff] %vm675, %v462
  %698 = vst.msk [vmem:[%s5 + $0xb0] sm:$0xff] %vm675, %v467
  %699 = vst.msk [vmem:[%s5 + $0xb8] sm:$0xff] %vm675, %v472
  %700 = vst.msk [vmem:[%s5 + $0xc0] sm:$0xff] %vm675, %v477
  %701 = vst.msk [vmem:[%s5 + $0xc8] sm:$0xff] %vm675, %v482
  %702 = vst.msk [vmem:[%s5 + $0xd0] sm:$0xff] %vm675, %v487
  %703 = vst.msk [vmem:[%s5 + $0xd8] sm:$0xff] %vm675, %v492
  %704 = vst.msk [vmem:[%s5 + $0xe0] sm:$0xff] %vm675, %v497
  %705 = vst.msk [vmem:[%s5 + $0xe8] sm:$0xff] %vm675, %v502
  %706 = vst.msk [vmem:[%s5 + $0xf0] sm:$0xff] %vm675, %v507
  %707 = vst.msk [vmem:[%s5 + $0xf8] sm:$0xff] %vm675, %v512
  %708 = vst.msk [vmem:[%s5 + $0x100] sm:$0xff] %vm675, %v517
  %709 = vst.msk [vmem:[%s5 + $0x108] sm:$0xff] %vm675, %v522
  %710 = vst.msk [vmem:[%s5 + $0x110] sm:$0xff] %vm675, %v527
  %711 = vst.msk [vmem:[%s5 + $0x118] sm:$0xff] %vm675, %v532
  %712 = vst.msk [vmem:[%s5 + $0x120] sm:$0xff] %vm675, %v537
  %713 = vst.msk [vmem:[%s5 + $0x128] sm:$0xff] %vm675, %v542
  %714 = vst.msk [vmem:[%s5 + $0x130] sm:$0xff] %vm675, %v547
  %715 = vst.msk [vmem:[%s5 + $0x138] sm:$0xff] %vm675, %v552
  %716 = vst.msk [vmem:[%s5 + $0x140] sm:$0xff] %vm675, %v557
  %717 = vst.msk [vmem:[%s5 + $0x148] sm:$0xff] %vm675, %v562
  %718 = vst.msk [vmem:[%s5 + $0x150] sm:$0xff] %vm675, %v567
  %719 = vst.msk [vmem:[%s5 + $0x158] sm:$0xff] %vm675, %v572
  %720 = vst.msk [vmem:[%s5 + $0x160] sm:$0xff] %vm675, %v577
  %721 = vst.msk [vmem:[%s5 + $0x168] sm:$0xff] %vm675, %v582
  %722 = vst.msk [vmem:[%s5 + $0x170] sm:$0xff] %vm675, %v587
  %723 = vst.msk [vmem:[%s5 + $0x178] sm:$0xff] %vm675, %v592
  %724 = vst.msk [vmem:[%s5 + $0x180] sm:$0xff] %vm675, %v597
  %725 = vst.msk [vmem:[%s5 + $0x188] sm:$0xff] %vm675, %v602
  %726 = vst.msk [vmem:[%s5 + $0x190] sm:$0xff] %vm675, %v607
  %727 = vst.msk [vmem:[%s5 + $0x198] sm:$0xff] %vm675, %v612
  %728 = vst.msk [vmem:[%s5 + $0x1a0] sm:$0xff] %vm675, %v617
  %729 = vst.msk [vmem:[%s5 + $0x1a8] sm:$0xff] %vm675, %v622
  %730 = vst.msk [vmem:[%s5 + $0x1b0] sm:$0xff] %vm675, %v627
  %731 = vst.msk [vmem:[%s5 + $0x1b8] sm:$0xff] %vm675, %v632
  %732 = vst.msk [vmem:[%s5 + $0x1c0] sm:$0xff] %vm675, %v637
  %733 = vst.msk [vmem:[%s5 + $0x1c8] sm:$0xff] %vm675, %v642
  %734 = vst.msk [vmem:[%s5 + $0x1d0] sm:$0xff] %vm675, %v647
  %735 = vst.msk [vmem:[%s5 + $0x1d8] sm:$0xff] %vm675, %v652
  %736 = vst.msk [vmem:[%s5 + $0x1e0] sm:$0xff] %vm675, %v657
  %737 = vst.msk [vmem:[%s5 + $0x1e8] sm:$0xff] %vm675, %v662
  %738 = vst.msk [vmem:[%s5 + $0x1f0] sm:$0xff] %vm675, %v667
  %739 = vst.msk [vmem:[%s5 + $0x1f8] sm:$0xff] %vm675, %v672
  %v740 = vld [vmem:[%s3] sm:$0xff]
  %v741 = vld [vmem:[%s3 + $0x8] sm:$0xff]
  %v742 = vld [vmem:[%s3 + $0x10] sm:$0xff]
  %v743 = vld [vmem:[%s3 + $0x18] sm:$0xff]
  %v744 = vld [vmem:[%s4] sm:$0x1]
  %v746 = vlaneseq
  %v747 = vshrl.u32 %v746, 7
  %v748 = vsub.s32 0, %v747
  %v749 = vrot.slane %v744, %v748
  %751 = vmatprep.subr.mxu0 0.0
  %752 = vmatpush1.msra.mxu0 0.0
  %753 = vmatprep.subr.mxu0 0.0
  %754 = vmatpush1.msra.mxu0 0.0
  %755 = vmatprep.subr.mxu0 0.0
  %756 = vmatpush1.msra.mxu0 0.0
  %757 = vmatprep.subr.mxu0 0.0
  %758 = vmatpush1.msra.mxu0 0.0
  %759 = vmatprep.subr.mxu0 0.0
  %760 = vmatpush1.msra.mxu0 0.0
  %761 = vmatprep.subr.mxu0 0.0
  %762 = vmatpush1.msra.mxu0 0.0
  %763 = vmatprep.subr.mxu0 0.0
  %764 = vmatpush1.msra.mxu0 0.0
  %765 = vmatprep.subr.mxu0 0.0
  %766 = vmatpush1.msra.mxu0 0.0
  %767 = vmatprep.subr.mxu0 0.0
  %768 = vmatpush1.msra.mxu0 0.0
  %769 = vmatprep.subr.mxu0 0.0
  %770 = vmatpush1.msra.mxu0 0.0
  %771 = vmatprep.subr.mxu0 0.0
  %772 = vmatpush1.msra.mxu0 0.0
  %773 = vmatprep.subr.mxu0 0.0
  %774 = vmatpush1.msra.mxu0 0.0
  %775 = vmatprep.subr.mxu0 0.0
  %776 = vmatpush1.msra.mxu0 %v743
  %777 = vmatprep.subr.mxu0 0.0
  %778 = vmatpush1.msra.mxu0 %v742
  %779 = vmatprep.subr.mxu0 0.0
  %780 = vmatpush1.msra.mxu0 %v741
  %781 = vmatprep.subr.mxu0 0.0
  %782 = vmatpush1.msra.mxu0 %v740
  %783 = vmatprep.subr.mxu0 0.0
  %784 = vmatpush2.msra.mxu0 0.0
  %785 = vmatprep.subr.mxu0 0.0
  %786 = vmatpush2.msra.mxu0 0.0
  %787 = vmatprep.subr.mxu0 0.0
  %788 = vmatpush2.msra.mxu0 0.0
  %789 = vmatprep.subr.mxu0 0.0
  %790 = vmatpush2.msra.mxu0 0.0
  %791 = vmatprep.subr.mxu0 0.0
  %792 = vmatpush2.msra.mxu0 0.0
  %793 = vmatprep.subr.mxu0 0.0
  %794 = vmatpush2.msra.mxu0 0.0
  %795 = vmatprep.subr.mxu0 0.0
  %796 = vmatpush2.msra.mxu0 0.0
  %797 = vmatprep.subr.mxu0 0.0
  %798 = vmatpush2.msra.mxu0 0.0
  %799 = vmatprep.subr.mxu0 0.0
  %800 = vmatpush2.msra.mxu0 0.0
  %801 = vmatprep.subr.mxu0 0.0
  %802 = vmatpush2.msra.mxu0 0.0
  %803 = vmatprep.subr.mxu0 0.0
  %804 = vmatpush2.msra.mxu0 0.0
  %805 = vmatprep.subr.mxu0 0.0
  %806 = vmatpush2.msra.mxu0 0.0
  %807 = vmatprep.subr.mxu0 0.0
  %808 = vmatpush2.msra.mxu0 0.0
  %809 = vmatprep.subr.mxu0 0.0
  %810 = vmatpush2.msra.mxu0 0.0
  %811 = vmatprep.subr.mxu0 0.0
  %812 = vmatpush2.msra.mxu0 0.0
  %813 = vmatprep.subr.mxu0 0.0
  %814 = vmatpush2.msra.mxu0 0.0
  %815 = vmatprep.mubr.f32.mxu0 0.0
  %816 = vmatmul.mubr.f32.gmra.mxu0 %v99
  %v817 = vpop.f32.mrf.mxu0
  %v818 = vadd.f32 %v749, %v817
  %v819 = vpop.f32.mrf.mxu0
  %820 = vmatprep.mubr.f32.mxu0 0.0
  %821 = vmatmul.mubr.f32.gmra.mxu0 %v102
  %v822 = vpop.f32.mrf.mxu0
  %v823 = vadd.f32 %v749, %v822
  %v824 = vpop.f32.mrf.mxu0
  %825 = vmatprep.mubr.f32.mxu0 0.0
  %826 = vmatmul.mubr.f32.gmra.mxu0 %v105
  %v827 = vpop.f32.mrf.mxu0
  %v828 = vadd.f32 %v749, %v827
  %v829 = vpop.f32.mrf.mxu0
  %830 = vmatprep.mubr.f32.mxu0 0.0
  %831 = vmatmul.mubr.f32.gmra.mxu0 %v108
  %v832 = vpop.f32.mrf.mxu0
  %v833 = vadd.f32 %v749, %v832
  %v834 = vpop.f32.mrf.mxu0
  %835 = vmatprep.mubr.f32.mxu0 0.0
  %836 = vmatmul.mubr.f32.gmra.mxu0 %v111
  %v837 = vpop.f32.mrf.mxu0
  %v838 = vadd.f32 %v749, %v837
  %v839 = vpop.f32.mrf.mxu0
  %840 = vmatprep.mubr.f32.mxu0 0.0
  %841 = vmatmul.mubr.f32.gmra.mxu0 %v114
  %v842 = vpop.f32.mrf.mxu0
  %v843 = vadd.f32 %v749, %v842
  %v844 = vpop.f32.mrf.mxu0
  %845 = vmatprep.mubr.f32.mxu0 0.0
  %846 = vmatmul.mubr.f32.gmra.mxu0 %v117
  %v847 = vpop.f32.mrf.mxu0
  %v848 = vadd.f32 %v749, %v847
  %v849 = vpop.f32.mrf.mxu0
  %850 = vmatprep.mubr.f32.mxu0 0.0
  %851 = vmatmul.mubr.f32.gmra.mxu0 %v120
  %v852 = vpop.f32.mrf.mxu0
  %v853 = vadd.f32 %v749, %v852
  %v854 = vpop.f32.mrf.mxu0
  %855 = vmatprep.mubr.f32.mxu0 0.0
  %856 = vmatmul.mubr.f32.gmra.mxu0 %v123
  %v857 = vpop.f32.mrf.mxu0
  %v858 = vadd.f32 %v749, %v857
  %v859 = vpop.f32.mrf.mxu0
  %860 = vmatprep.mubr.f32.mxu0 0.0
  %861 = vmatmul.mubr.f32.gmra.mxu0 %v126
  %v862 = vpop.f32.mrf.mxu0
  %v863 = vadd.f32 %v749, %v862
  %v864 = vpop.f32.mrf.mxu0
  %865 = vmatprep.mubr.f32.mxu0 0.0
  %866 = vmatmul.mubr.f32.gmra.mxu0 %v129
  %v867 = vpop.f32.mrf.mxu0
  %v868 = vadd.f32 %v749, %v867
  %v869 = vpop.f32.mrf.mxu0
  %870 = vmatprep.mubr.f32.mxu0 0.0
  %871 = vmatmul.mubr.f32.gmra.mxu0 %v132
  %v872 = vpop.f32.mrf.mxu0
  %v873 = vadd.f32 %v749, %v872
  %v874 = vpop.f32.mrf.mxu0
  %875 = vmatprep.mubr.f32.mxu0 0.0
  %876 = vmatmul.mubr.f32.gmra.mxu0 %v135
  %v877 = vpop.f32.mrf.mxu0
  %v878 = vadd.f32 %v749, %v877
  %v879 = vpop.f32.mrf.mxu0
  %880 = vmatprep.mubr.f32.mxu0 0.0
  %881 = vmatmul.mubr.f32.gmra.mxu0 %v138
  %v882 = vpop.f32.mrf.mxu0
  %v883 = vadd.f32 %v749, %v882
  %v884 = vpop.f32.mrf.mxu0
  %885 = vmatprep.mubr.f32.mxu0 0.0
  %886 = vmatmul.mubr.f32.gmra.mxu0 %v141
  %v887 = vpop.f32.mrf.mxu0
  %v888 = vadd.f32 %v749, %v887
  %v889 = vpop.f32.mrf.mxu0
  %890 = vmatprep.mubr.f32.mxu0 0.0
  %891 = vmatmul.mubr.f32.gmra.mxu0 %v144
  %v892 = vpop.f32.mrf.mxu0
  %v893 = vadd.f32 %v749, %v892
  %v894 = vpop.f32.mrf.mxu0
  %895 = vmatprep.mubr.f32.mxu0 0.0
  %896 = vmatmul.mubr.f32.gmra.mxu0 %v147
  %v897 = vpop.f32.mrf.mxu0
  %v898 = vadd.f32 %v749, %v897
  %v899 = vpop.f32.mrf.mxu0
  %900 = vmatprep.mubr.f32.mxu0 0.0
  %901 = vmatmul.mubr.f32.gmra.mxu0 %v150
  %v902 = vpop.f32.mrf.mxu0
  %v903 = vadd.f32 %v749, %v902
  %v904 = vpop.f32.mrf.mxu0
  %905 = vmatprep.mubr.f32.mxu0 0.0
  %906 = vmatmul.mubr.f32.gmra.mxu0 %v153
  %v907 = vpop.f32.mrf.mxu0
  %v908 = vadd.f32 %v749, %v907
  %v909 = vpop.f32.mrf.mxu0
  %910 = vmatprep.mubr.f32.mxu0 0.0
  %911 = vmatmul.mubr.f32.gmra.mxu0 %v156
  %v912 = vpop.f32.mrf.mxu0
  %v913 = vadd.f32 %v749, %v912
  %v914 = vpop.f32.mrf.mxu0
  %915 = vmatprep.mubr.f32.mxu0 0.0
  %916 = vmatmul.mubr.f32.gmra.mxu0 %v159
  %v917 = vpop.f32.mrf.mxu0
  %v918 = vadd.f32 %v749, %v917
  %v919 = vpop.f32.mrf.mxu0
  %920 = vmatprep.mubr.f32.mxu0 0.0
  %921 = vmatmul.mubr.f32.gmra.mxu0 %v162
  %v922 = vpop.f32.mrf.mxu0
  %v923 = vadd.f32 %v749, %v922
  %v924 = vpop.f32.mrf.mxu0
  %925 = vmatprep.mubr.f32.mxu0 0.0
  %926 = vmatmul.mubr.f32.gmra.mxu0 %v165
  %v927 = vpop.f32.mrf.mxu0
  %v928 = vadd.f32 %v749, %v927
  %v929 = vpop.f32.mrf.mxu0
  %930 = vmatprep.mubr.f32.mxu0 0.0
  %931 = vmatmul.mubr.f32.gmra.mxu0 %v168
  %v932 = vpop.f32.mrf.mxu0
  %v933 = vadd.f32 %v749, %v932
  %v934 = vpop.f32.mrf.mxu0
  %935 = vmatprep.mubr.f32.mxu0 0.0
  %936 = vmatmul.mubr.f32.gmra.mxu0 %v171
  %v937 = vpop.f32.mrf.mxu0
  %v938 = vadd.f32 %v749, %v937
  %v939 = vpop.f32.mrf.mxu0
  %940 = vmatprep.mubr.f32.mxu0 0.0
  %941 = vmatmul.mubr.f32.gmra.mxu0 %v174
  %v942 = vpop.f32.mrf.mxu0
  %v943 = vadd.f32 %v749, %v942
  %v944 = vpop.f32.mrf.mxu0
  %945 = vmatprep.mubr.f32.mxu0 0.0
  %946 = vmatmul.mubr.f32.gmra.mxu0 %v177
  %v947 = vpop.f32.mrf.mxu0
  %v948 = vadd.f32 %v749, %v947
  %v949 = vpop.f32.mrf.mxu0
  %950 = vmatprep.mubr.f32.mxu0 0.0
  %951 = vmatmul.mubr.f32.gmra.mxu0 %v180
  %v952 = vpop.f32.mrf.mxu0
  %v953 = vadd.f32 %v749, %v952
  %v954 = vpop.f32.mrf.mxu0
  %955 = vmatprep.mubr.f32.mxu0 0.0
  %956 = vmatmul.mubr.f32.gmra.mxu0 %v183
  %v957 = vpop.f32.mrf.mxu0
  %v958 = vadd.f32 %v749, %v957
  %v959 = vpop.f32.mrf.mxu0
  %960 = vmatprep.mubr.f32.mxu0 0.0
  %961 = vmatmul.mubr.f32.gmra.mxu0 %v186
  %v962 = vpop.f32.mrf.mxu0
  %v963 = vadd.f32 %v749, %v962
  %v964 = vpop.f32.mrf.mxu0
  %965 = vmatprep.mubr.f32.mxu0 0.0
  %966 = vmatmul.mubr.f32.gmra.mxu0 %v189
  %v967 = vpop.f32.mrf.mxu0
  %v968 = vadd.f32 %v749, %v967
  %v969 = vpop.f32.mrf.mxu0
  %970 = vmatprep.mubr.f32.mxu0 0.0
  %971 = vmatmul.mubr.f32.gmra.mxu0 %v192
  %v972 = vpop.f32.mrf.mxu0
  %v973 = vadd.f32 %v749, %v972
  %v974 = vpop.f32.mrf.mxu0
  %975 = vmatprep.mubr.f32.mxu0 0.0
  %976 = vmatmul.mubr.f32.gmra.mxu0 %v195
  %v977 = vpop.f32.mrf.mxu0
  %v978 = vadd.f32 %v749, %v977
  %v979 = vpop.f32.mrf.mxu0
  %980 = vmatprep.mubr.f32.mxu0 0.0
  %981 = vmatmul.mubr.f32.gmra.mxu0 %v198
  %v982 = vpop.f32.mrf.mxu0
  %v983 = vadd.f32 %v749, %v982
  %v984 = vpop.f32.mrf.mxu0
  %985 = vmatprep.mubr.f32.mxu0 0.0
  %986 = vmatmul.mubr.f32.gmra.mxu0 %v201
  %v987 = vpop.f32.mrf.mxu0
  %v988 = vadd.f32 %v749, %v987
  %v989 = vpop.f32.mrf.mxu0
  %990 = vmatprep.mubr.f32.mxu0 0.0
  %991 = vmatmul.mubr.f32.gmra.mxu0 %v204
  %v992 = vpop.f32.mrf.mxu0
  %v993 = vadd.f32 %v749, %v992
  %v994 = vpop.f32.mrf.mxu0
  %995 = vmatprep.mubr.f32.mxu0 0.0
  %996 = vmatmul.mubr.f32.gmra.mxu0 %v207
  %v997 = vpop.f32.mrf.mxu0
  %v998 = vadd.f32 %v749, %v997
  %v999 = vpop.f32.mrf.mxu0
  %1000 = vmatprep.mubr.f32.mxu0 0.0
  %1001 = vmatmul.mubr.f32.gmra.mxu0 %v210
  %v1002 = vpop.f32.mrf.mxu0
  %v1003 = vadd.f32 %v749, %v1002
  %v1004 = vpop.f32.mrf.mxu0
  %1005 = vmatprep.mubr.f32.mxu0 0.0
  %1006 = vmatmul.mubr.f32.gmra.mxu0 %v213
  %v1007 = vpop.f32.mrf.mxu0
  %v1008 = vadd.f32 %v749, %v1007
  %v1009 = vpop.f32.mrf.mxu0
  %1010 = vmatprep.mubr.f32.mxu0 0.0
  %1011 = vmatmul.mubr.f32.gmra.mxu0 %v216
  %v1012 = vpop.f32.mrf.mxu0
  %v1013 = vadd.f32 %v749, %v1012
  %v1014 = vpop.f32.mrf.mxu0
  %1015 = vmatprep.mubr.f32.mxu0 0.0
  %1016 = vmatmul.mubr.f32.gmra.mxu0 %v219
  %v1017 = vpop.f32.mrf.mxu0
  %v1018 = vadd.f32 %v749, %v1017
  %v1019 = vpop.f32.mrf.mxu0
  %1020 = vmatprep.mubr.f32.mxu0 0.0
  %1021 = vmatmul.mubr.f32.gmra.mxu0 %v222
  %v1022 = vpop.f32.mrf.mxu0
  %v1023 = vadd.f32 %v749, %v1022
  %v1024 = vpop.f32.mrf.mxu0
  %1025 = vmatprep.mubr.f32.mxu0 0.0
  %1026 = vmatmul.mubr.f32.gmra.mxu0 %v225
  %v1027 = vpop.f32.mrf.mxu0
  %v1028 = vadd.f32 %v749, %v1027
  %v1029 = vpop.f32.mrf.mxu0
  %1030 = vmatprep.mubr.f32.mxu0 0.0
  %1031 = vmatmul.mubr.f32.gmra.mxu0 %v228
  %v1032 = vpop.f32.mrf.mxu0
  %v1033 = vadd.f32 %v749, %v1032
  %v1034 = vpop.f32.mrf.mxu0
  %1035 = vmatprep.mubr.f32.mxu0 0.0
  %1036 = vmatmul.mubr.f32.gmra.mxu0 %v231
  %v1037 = vpop.f32.mrf.mxu0
  %v1038 = vadd.f32 %v749, %v1037
  %v1039 = vpop.f32.mrf.mxu0
  %1040 = vmatprep.mubr.f32.mxu0 0.0
  %1041 = vmatmul.mubr.f32.gmra.mxu0 %v234
  %v1042 = vpop.f32.mrf.mxu0
  %v1043 = vadd.f32 %v749, %v1042
  %v1044 = vpop.f32.mrf.mxu0
  %1045 = vmatprep.mubr.f32.mxu0 0.0
  %1046 = vmatmul.mubr.f32.gmra.mxu0 %v237
  %v1047 = vpop.f32.mrf.mxu0
  %v1048 = vadd.f32 %v749, %v1047
  %v1049 = vpop.f32.mrf.mxu0
  %1050 = vmatprep.mubr.f32.mxu0 0.0
  %1051 = vmatmul.mubr.f32.gmra.mxu0 %v240
  %v1052 = vpop.f32.mrf.mxu0
  %v1053 = vadd.f32 %v749, %v1052
  %v1054 = vpop.f32.mrf.mxu0
  %1055 = vmatprep.mubr.f32.mxu0 0.0
  %1056 = vmatmul.mubr.f32.gmra.mxu0 %v243
  %v1057 = vpop.f32.mrf.mxu0
  %v1058 = vadd.f32 %v749, %v1057
  %v1059 = vpop.f32.mrf.mxu0
  %1060 = vmatprep.mubr.f32.mxu0 0.0
  %1061 = vmatmul.mubr.f32.gmra.mxu0 %v246
  %v1062 = vpop.f32.mrf.mxu0
  %v1063 = vadd.f32 %v749, %v1062
  %v1064 = vpop.f32.mrf.mxu0
  %1065 = vmatprep.mubr.f32.mxu0 0.0
  %1066 = vmatmul.mubr.f32.gmra.mxu0 %v249
  %v1067 = vpop.f32.mrf.mxu0
  %v1068 = vadd.f32 %v749, %v1067
  %v1069 = vpop.f32.mrf.mxu0
  %1070 = vmatprep.mubr.f32.mxu0 0.0
  %1071 = vmatmul.mubr.f32.gmra.mxu0 %v252
  %v1072 = vpop.f32.mrf.mxu0
  %v1073 = vadd.f32 %v749, %v1072
  %v1074 = vpop.f32.mrf.mxu0
  %1075 = vmatprep.mubr.f32.mxu0 0.0
  %1076 = vmatmul.mubr.f32.gmra.mxu0 %v255
  %v1077 = vpop.f32.mrf.mxu0
  %v1078 = vadd.f32 %v749, %v1077
  %v1079 = vpop.f32.mrf.mxu0
  %1080 = vmatprep.mubr.f32.mxu0 0.0
  %1081 = vmatmul.mubr.f32.gmra.mxu0 %v258
  %v1082 = vpop.f32.mrf.mxu0
  %v1083 = vadd.f32 %v749, %v1082
  %v1084 = vpop.f32.mrf.mxu0
  %1085 = vmatprep.mubr.f32.mxu0 0.0
  %1086 = vmatmul.mubr.f32.gmra.mxu0 %v261
  %v1087 = vpop.f32.mrf.mxu0
  %v1088 = vadd.f32 %v749, %v1087
  %v1089 = vpop.f32.mrf.mxu0
  %1090 = vmatprep.mubr.f32.mxu0 0.0
  %1091 = vmatmul.mubr.f32.gmra.mxu0 %v264
  %v1092 = vpop.f32.mrf.mxu0
  %v1093 = vadd.f32 %v749, %v1092
  %v1094 = vpop.f32.mrf.mxu0
  %1095 = vmatprep.mubr.f32.mxu0 0.0
  %1096 = vmatmul.mubr.f32.gmra.mxu0 %v267
  %v1097 = vpop.f32.mrf.mxu0
  %v1098 = vadd.f32 %v749, %v1097
  %v1099 = vpop.f32.mrf.mxu0
  %1100 = vmatprep.mubr.f32.mxu0 0.0
  %1101 = vmatmul.mubr.f32.gmra.mxu0 %v270
  %v1102 = vpop.f32.mrf.mxu0
  %v1103 = vadd.f32 %v749, %v1102
  %v1104 = vpop.f32.mrf.mxu0
  %1105 = vmatprep.mubr.f32.mxu0 0.0
  %1106 = vmatmul.mubr.f32.gmra.mxu0 %v273
  %v1107 = vpop.f32.mrf.mxu0
  %v1108 = vadd.f32 %v749, %v1107
  %v1109 = vpop.f32.mrf.mxu0
  %1110 = vmatprep.mubr.f32.mxu0 0.0
  %1111 = vmatmul.mubr.f32.gmra.mxu0 %v276
  %v1112 = vpop.f32.mrf.mxu0
  %v1113 = vadd.f32 %v749, %v1112
  %v1114 = vpop.f32.mrf.mxu0
  %1115 = vmatprep.mubr.f32.mxu0 0.0
  %1116 = vmatmul.mubr.f32.gmra.mxu0 %v279
  %v1117 = vpop.f32.mrf.mxu0
  %v1118 = vadd.f32 %v749, %v1117
  %v1119 = vpop.f32.mrf.mxu0
  %1120 = vmatprep.mubr.f32.mxu0 0.0
  %1121 = vmatmul.mubr.f32.gmra.mxu0 %v282
  %v1122 = vpop.f32.mrf.mxu0
  %v1123 = vadd.f32 %v749, %v1122
  %v1124 = vpop.f32.mrf.mxu0
  %1125 = vmatprep.mubr.f32.mxu0 0.0
  %1126 = vmatmul.mubr.f32.gmra.mxu0 %v285
  %v1127 = vpop.f32.mrf.mxu0
  %v1128 = vadd.f32 %v749, %v1127
  %v1129 = vpop.f32.mrf.mxu0
  %1130 = vmatprep.mubr.f32.mxu0 0.0
  %1131 = vmatmul.mubr.f32.gmra.mxu0 %v288
  %v1132 = vpop.f32.mrf.mxu0
  %v1133 = vadd.f32 %v749, %v1132
  %v1134 = vpop.f32.mrf.mxu0
  %1135 = vdwg.mxu0
  %vm1136 = vcmask 130048
  %1137 = vst.msk [vmem:[%s6] sm:$0xff] %vm1136, %v818
  %1138 = vst.msk [vmem:[%s6 + $0x8] sm:$0xff] %vm1136, %v823
  %1139 = vst.msk [vmem:[%s6 + $0x10] sm:$0xff] %vm1136, %v828
  %1140 = vst.msk [vmem:[%s6 + $0x18] sm:$0xff] %vm1136, %v833
  %1141 = vst.msk [vmem:[%s6 + $0x20] sm:$0xff] %vm1136, %v838
  %1142 = vst.msk [vmem:[%s6 + $0x28] sm:$0xff] %vm1136, %v843
  %1143 = vst.msk [vmem:[%s6 + $0x30] sm:$0xff] %vm1136, %v848
  %1144 = vst.msk [vmem:[%s6 + $0x38] sm:$0xff] %vm1136, %v853
  %1145 = vst.msk [vmem:[%s6 + $0x40] sm:$0xff] %vm1136, %v858
  %1146 = vst.msk [vmem:[%s6 + $0x48] sm:$0xff] %vm1136, %v863
  %1147 = vst.msk [vmem:[%s6 + $0x50] sm:$0xff] %vm1136, %v868
  %1148 = vst.msk [vmem:[%s6 + $0x58] sm:$0xff] %vm1136, %v873
  %1149 = vst.msk [vmem:[%s6 + $0x60] sm:$0xff] %vm1136, %v878
  %1150 = vst.msk [vmem:[%s6 + $0x68] sm:$0xff] %vm1136, %v883
  %1151 = vst.msk [vmem:[%s6 + $0x70] sm:$0xff] %vm1136, %v888
  %1152 = vst.msk [vmem:[%s6 + $0x78] sm:$0xff] %vm1136, %v893
  %1153 = vst.msk [vmem:[%s6 + $0x80] sm:$0xff] %vm1136, %v898
  %1154 = vst.msk [vmem:[%s6 + $0x88] sm:$0xff] %vm1136, %v903
  %1155 = vst.msk [vmem:[%s6 + $0x90] sm:$0xff] %vm1136, %v908
  %1156 = vst.msk [vmem:[%s6 + $0x98] sm:$0xff] %vm1136, %v913
  %1157 = vst.msk [vmem:[%s6 + $0xa0] sm:$0xff] %vm1136, %v918
  %1158 = vst.msk [vmem:[%s6 + $0xa8] sm:$0xff] %vm1136, %v923
  %1159 = vst.msk [vmem:[%s6 + $0xb0] sm:$0xff] %vm1136, %v928
  %1160 = vst.msk [vmem:[%s6 + $0xb8] sm:$0xff] %vm1136, %v933
  %1161 = vst.msk [vmem:[%s6 + $0xc0] sm:$0xff] %vm1136, %v938
  %1162 = vst.msk [vmem:[%s6 + $0xc8] sm:$0xff] %vm1136, %v943
  %1163 = vst.msk [vmem:[%s6 + $0xd0] sm:$0xff] %vm1136, %v948
  %1164 = vst.msk [vmem:[%s6 + $0xd8] sm:$0xff] %vm1136, %v953
  %1165 = vst.msk [vmem:[%s6 + $0xe0] sm:$0xff] %vm1136, %v958
  %1166 = vst.msk [vmem:[%s6 + $0xe8] sm:$0xff] %vm1136, %v963
  %1167 = vst.msk [vmem:[%s6 + $0xf0] sm:$0xff] %vm1136, %v968
  %1168 = vst.msk [vmem:[%s6 + $0xf8] sm:$0xff] %vm1136, %v973
  %1169 = vst.msk [vmem:[%s6 + $0x100] sm:$0xff] %vm1136, %v978
  %1170 = vst.msk [vmem:[%s6 + $0x108] sm:$0xff] %vm1136, %v983
  %1171 = vst.msk [vmem:[%s6 + $0x110] sm:$0xff] %vm1136, %v988
  %1172 = vst.msk [vmem:[%s6 + $0x118] sm:$0xff] %vm1136, %v993
  %1173 = vst.msk [vmem:[%s6 + $0x120] sm:$0xff] %vm1136, %v998
  %1174 = vst.msk [vmem:[%s6 + $0x128] sm:$0xff] %vm1136, %v1003
  %1175 = vst.msk [vmem:[%s6 + $0x130] sm:$0xff] %vm1136, %v1008
  %1176 = vst.msk [vmem:[%s6 + $0x138] sm:$0xff] %vm1136, %v1013
  %1177 = vst.msk [vmem:[%s6 + $0x140] sm:$0xff] %vm1136, %v1018
  %1178 = vst.msk [vmem:[%s6 + $0x148] sm:$0xff] %vm1136, %v1023
  %1179 = vst.msk [vmem:[%s6 + $0x150] sm:$0xff] %vm1136, %v1028
  %1180 = vst.msk [vmem:[%s6 + $0x158] sm:$0xff] %vm1136, %v1033
  %1181 = vst.msk [vmem:[%s6 + $0x160] sm:$0xff] %vm1136, %v1038
  %1182 = vst.msk [vmem:[%s6 + $0x168] sm:$0xff] %vm1136, %v1043
  %1183 = vst.msk [vmem:[%s6 + $0x170] sm:$0xff] %vm1136, %v1048
  %1184 = vst.msk [vmem:[%s6 + $0x178] sm:$0xff] %vm1136, %v1053
  %1185 = vst.msk [vmem:[%s6 + $0x180] sm:$0xff] %vm1136, %v1058
  %1186 = vst.msk [vmem:[%s6 + $0x188] sm:$0xff] %vm1136, %v1063
  %1187 = vst.msk [vmem:[%s6 + $0x190] sm:$0xff] %vm1136, %v1068
  %1188 = vst.msk [vmem:[%s6 + $0x198] sm:$0xff] %vm1136, %v1073
  %1189 = vst.msk [vmem:[%s6 + $0x1a0] sm:$0xff] %vm1136, %v1078
  %1190 = vst.msk [vmem:[%s6 + $0x1a8] sm:$0xff] %vm1136, %v1083
  %1191 = vst.msk [vmem:[%s6 + $0x1b0] sm:$0xff] %vm1136, %v1088
  %1192 = vst.msk [vmem:[%s6 + $0x1b8] sm:$0xff] %vm1136, %v1093
  %1193 = vst.msk [vmem:[%s6 + $0x1c0] sm:$0xff] %vm1136, %v1098
  %1194 = vst.msk [vmem:[%s6 + $0x1c8] sm:$0xff] %vm1136, %v1103
  %1195 = vst.msk [vmem:[%s6 + $0x1d0] sm:$0xff] %vm1136, %v1108
  %1196 = vst.msk [vmem:[%s6 + $0x1d8] sm:$0xff] %vm1136, %v1113
  %1197 = vst.msk [vmem:[%s6 + $0x1e0] sm:$0xff] %vm1136, %v1118
  %1198 = vst.msk [vmem:[%s6 + $0x1e8] sm:$0xff] %vm1136, %v1123
  %1199 = vst.msk [vmem:[%s6 + $0x1f0] sm:$0xff] %vm1136, %v1128
  %1200 = vst.msk [vmem:[%s6 + $0x1f8] sm:$0xff] %vm1136, %v1133
  // Predicated region
  $region22: #{tpu_custom_call.1} parent=0 // pred_check
    _
  $region23: #{tpu_custom_call.1} parent=0 // pred_check_branch
    %1202 = sbr.rel (0) target = $region25
  $region24: #{tpu_custom_call.1} parent=0 // pred_region
    _
  $region25: #{tpu_custom_call.1} parent=0 // pred_fallthru
    _
  // Predicated region
  $region26: #{tpu_custom_call.1} parent=0 // pred_check
    _
  $region27: #{tpu_custom_call.1} parent=0 // pred_check_branch
    %1204 = sbr.rel (0) target = $region29
  $region28: #{tpu_custom_call.1} parent=0 // pred_region
    _
  $region29: #{tpu_custom_call.1} parent=0 // pred_fallthru
    _
  // Predicated region
  $region30: #{tpu_custom_call.1} parent=0 // pred_check
    _
  $region31: #{tpu_custom_call.1} parent=0 // pred_check_branch
    %1206 = sbr.rel (0) target = $region33
  $region32: #{tpu_custom_call.1} parent=0 // pred_region
    _
  $region33: #{tpu_custom_call.1} parent=0 // pred_fallthru
    _
  // Predicated region
  $region34: #{tpu_custom_call.1} parent=0 // pred_check
    _
  $region35: #{tpu_custom_call.1} parent=0 // pred_check_branch
    %1208 = sbr.rel (0) target = $region37
  $region36: #{tpu_custom_call.1} parent=0 // pred_region
    _
  $region37: #{tpu_custom_call.1} parent=0 // pred_fallthru
    _

</llo_original>
